<compile_context>
chip_gen: v5e
topology: v5e:2x2
jax: 0.10.0
libtpu: 0.0.40
codegen_flags: <defaults>
</compile_context>

<pallas_src>
import functools

import jax
import jax.numpy as jnp
from jax.experimental import pallas as pl
from jax.experimental.pallas import tpu as pltpu


# ---------------------------------------------------------------------------
# Kernel: one SAGEConv('mean') layer, row-tiled with a column-reduction axis.
# ---------------------------------------------------------------------------
def _sage_layer_kernel(a_ref,      # (tm, tk)      bf16  adjacency tile
                       xn_ref,     # (tk, F_pad)   bf16  neighbor features
                       xs_ref,     # (tm, F_pad)   bf16  self features
                       w_ref,      # (2*F_pad, H)  bf16  [W_self ; W_neigh]
                       b_ref,      # (1, H)        f32   bias
                       o_ref,      # (tm, H)       out
                       acc_ref,    # (tm, F_pad)   f32   neighbor-sum scratch
                       *, apply_relu: bool):
    k = pl.program_id(1)

    @pl.when(k == 0)
    def _():
        acc_ref[...] = jnp.zeros_like(acc_ref)

    # Accumulate mean-aggregated neighbor features: acc += A_tile @ X_tile.
    acc_ref[...] += jnp.dot(a_ref[...], xn_ref[...],
                            preferred_element_type=jnp.float32)

    @pl.when(k == pl.num_programs(1) - 1)
    def _():
        # Fused projection: [h_self | h_neigh] @ [W_self ; W_neigh] + b
        h_cat = jnp.concatenate(
            [xs_ref[...], acc_ref[...].astype(xs_ref.dtype)], axis=-1)
        h = jnp.dot(h_cat, w_ref[...],
                    preferred_element_type=jnp.float32) + b_ref[...]
        if apply_relu:
            h = jnp.maximum(h, 0.0)
        o_ref[...] = h.astype(o_ref.dtype)


def _sage_conv_layer(a_bf16, x_bf16, w_cat_bf16, b_f32, *,
                     apply_relu, out_dtype, tm=128, tk=128):
    n_pad = a_bf16.shape[0]
    f_pad = x_bf16.shape[1]
    h_pad = w_cat_bf16.shape[1]
    grid = (n_pad // tm, n_pad // tk)

    flops = 2 * n_pad * n_pad * f_pad + 2 * n_pad * (2 * f_pad) * h_pad
    bytes_accessed = (a_bf16.size * 2 + x_bf16.size * 2 + w_cat_bf16.size * 2
                      + b_f32.size * 4
                      + n_pad * h_pad * jnp.dtype(out_dtype).itemsize)

    kernel = functools.partial(_sage_layer_kernel, apply_relu=apply_relu)

    return pl.pallas_call(
        kernel,
        out_shape=jax.ShapeDtypeStruct((n_pad, h_pad), out_dtype),
        grid_spec=pltpu.PrefetchScalarGridSpec(
            num_scalar_prefetch=0,
            grid=grid,
            in_specs=[
                pl.BlockSpec((tm, tk), lambda i, k: (i, k)),          # A tile
                pl.BlockSpec((tk, f_pad), lambda i, k: (k, 0)),       # X (neighbor rows)
                pl.BlockSpec((tm, f_pad), lambda i, k: (i, 0)),       # X (self rows)
                pl.BlockSpec((2 * f_pad, h_pad), lambda i, k: (0, 0)),  # fused W
                pl.BlockSpec((1, h_pad), lambda i, k: (0, 0)),        # bias
            ],
            out_specs=pl.BlockSpec((tm, h_pad), lambda i, k: (i, 0)),
            scratch_shapes=[pltpu.VMEM((tm, f_pad), jnp.float32)],
        ),
        compiler_params=pltpu.CompilerParams(
            dimension_semantics=("parallel", "arbitrary")),
        cost_estimate=pl.CostEstimate(flops=flops, transcendentals=0,
                                      bytes_accessed=bytes_accessed),
    )(a_bf16, x_bf16, x_bf16, w_cat_bf16, b_f32)


# ---------------------------------------------------------------------------
# Wrapper: pad to lane-dense shapes, fuse weights, run conv1 -> ReLU -> conv2.
# ---------------------------------------------------------------------------
def _round_up(v, m):
    return ((v + m - 1) // m) * m


def _pad2d(x, rows, cols):
    return jnp.pad(x, ((0, rows - x.shape[0]), (0, cols - x.shape[1])))


def graphsage_forward(a_norm, x, params, *, tm=128, tk=128):
    n, in_feats = x.shape
    h_feats = params["w1_neigh"].shape[1]

    f_pad = _round_up(in_feats, 128)       # lane-dense input features
    h_pad = _round_up(h_feats, 128)        # lane-dense hidden features
    n_pad = _round_up(n, max(tm, tk))      # row tiles

    a_p = _pad2d(a_norm, n_pad, n_pad).astype(jnp.bfloat16)
    x_p = _pad2d(x, n_pad, f_pad).astype(jnp.bfloat16)

    # Fused weights: rows = [W_self ; W_neigh], zero-padded to lane widths.
    w1 = jnp.concatenate([_pad2d(params["w1_self"], f_pad, h_pad),
                          _pad2d(params["w1_neigh"], f_pad, h_pad)],
                         axis=0).astype(jnp.bfloat16)
    b1 = _pad2d(params["b1"], 1, h_pad).astype(jnp.float32)
    w2 = jnp.concatenate([_pad2d(params["w2_self"], h_pad, h_pad),
                          _pad2d(params["w2_neigh"], h_pad, h_pad)],
                         axis=0).astype(jnp.bfloat16)
    b2 = _pad2d(params["b2"], 1, h_pad).astype(jnp.float32)

    # Layer 1 (+ReLU), emitted in bf16 so layer 2's MXU operands are native.
    h1 = _sage_conv_layer(a_p, x_p, w1, b1, apply_relu=True,
                          out_dtype=jnp.bfloat16, tm=tm, tk=tk)
    # Layer 2, f32 output.
    h2 = _sage_conv_layer(a_p, h1, w2, b2, apply_relu=False,
                          out_dtype=jnp.float32, tm=tm, tk=tk)
    return h2[:n, :h_feats]


# ---------------------------------------------------------------------------
# Params + plain-JAX reference (f32) for correctness checking.
# ---------------------------------------------------------------------------
def make_params(key, in_feats, h_feats):
    ks = jax.random.split(key, 6)
    s1 = 1.0 / jnp.sqrt(in_feats)
    s2 = 1.0 / jnp.sqrt(h_feats)
    return {
        "w1_self":  jax.random.normal(ks[0], (in_feats, h_feats), jnp.float32) * s1,
        "w1_neigh": jax.random.normal(ks[1], (in_feats, h_feats), jnp.float32) * s1,
        "b1":       jax.random.normal(ks[2], (1, h_feats), jnp.float32) * 0.01,
        "w2_self":  jax.random.normal(ks[3], (h_feats, h_feats), jnp.float32) * s2,
        "w2_neigh": jax.random.normal(ks[4], (h_feats, h_feats), jnp.float32) * s2,
        "b2":       jax.random.normal(ks[5], (1, h_feats), jnp.float32) * 0.01,
    }


def reference_forward(a_norm, x, p):
    h1 = x @ p["w1_self"] + (a_norm @ x) @ p["w1_neigh"] + p["b1"]
    h1 = jnp.maximum(h1, 0.0)
    return h1 @ p["w2_self"] + (a_norm @ h1) @ p["w2_neigh"] + p["b2"]


if __name__ == "__main__":
    N, IN_FEATS, H_FEATS = 256, 16, 32   # grid (2,2) with 128x128 tiles

    key = jax.random.PRNGKey(0)
    k_adj, k_feat, k_params = jax.random.split(key, 3)

    # Deterministic random graph: binary adjacency, no self loops,
    # row-normalized by degree (clamped at 1) -> 'mean' aggregation matrix.
    adj = (jax.random.uniform(k_adj, (N, N)) < 0.1).astype(jnp.float32)
    adj = adj * (1.0 - jnp.eye(N, dtype=jnp.float32))
    deg = jnp.clip(adj.sum(axis=1, keepdims=True), 1.0, None)
    a_norm = adj / deg                                   # (N, N)

    x = jax.random.normal(k_feat, (N, IN_FEATS), jnp.float32)
    params = make_params(k_params, IN_FEATS, H_FEATS)

    out = jax.block_until_ready(graphsage_forward(a_norm, x, params))
    ref = reference_forward(a_norm, x, params)

    assert out.shape == (N, H_FEATS)
    # bf16 MXU operands (f32 accumulation) -> relaxed tolerance vs f32 ref.
    assert jnp.allclose(out, ref, atol=5e-2, rtol=5e-2), (
        f"max abs err = {float(jnp.max(jnp.abs(out - ref)))}")

    print("KERNEL_OK")
</pallas_src>

<mosaic_0001>
module attributes {stable_mosaic.version = 11 : i64} {
  func.func @_sage_layer_kernel(%arg0: i32, %arg1: i32, %arg2: memref<128x128xbf16, #tpu.memory_space<vmem>>, %arg3: memref<128x128xbf16, #tpu.memory_space<vmem>>, %arg4: memref<128x128xbf16, #tpu.memory_space<vmem>>, %arg5: memref<256x128xbf16, #tpu.memory_space<vmem>>, %arg6: memref<1x128xf32, #tpu.memory_space<vmem>>, %arg7: memref<128x128xbf16, #tpu.memory_space<vmem>>, %arg8: memref<128x128xf32, #tpu.memory_space<vmem>>) attributes {dimension_semantics = [#tpu.dimension_semantics<parallel>, #tpu.dimension_semantics<arbitrary>], iteration_bounds = array<i64: 2, 2>, scalar_prefetch = 0 : i64, scratch_operands = 1 : i64, tpu.core_type = #tpu.core_type<tc>, window_params = [{transform_indices = @transform_0, window_bounds = array<i64: 128, 128>}, {transform_indices = @transform_1, window_bounds = array<i64: 128, 128>}, {transform_indices = @transform_2, window_bounds = array<i64: 128, 128>}, {pipeline_mode = #tpu.pipeline_mode<synchronous>, transform_indices = @transform_3, window_bounds = array<i64: 256, 128>}, {pipeline_mode = #tpu.pipeline_mode<synchronous>, transform_indices = @transform_4, window_bounds = array<i64: 1, 128>}, {transform_indices = @transform_5, window_bounds = array<i64: 128, 128>}]} {
    %c0_i32 = arith.constant 0 : i32
    %0 = arith.cmpi eq, %arg1, %c0_i32 : i32
    %1 = arith.extui %0 : i1 to i32
    %c0_i32_0 = arith.constant 0 : i32
    %2 = arith.cmpi ne, %1, %c0_i32_0 : i32
    scf.if %2 {
      %cst_9 = arith.constant 0.000000e+00 : f32
      %12 = vector.broadcast %cst_9 : f32 to vector<128x128xf32>
      %c0_10 = arith.constant 0 : index
      %c0_11 = arith.constant 0 : index
      %13 = vector.load %arg8[%c0_10, %c0_11] : memref<128x128xf32, #tpu.memory_space<vmem>>, vector<128x128xf32>
      tpu.vector_store %arg8[%c0_10, %c0_11], %12 {strides = array<i32>} : memref<128x128xf32, #tpu.memory_space<vmem>>, vector<128x128xf32>,
    } else {
    }
    %c0 = arith.constant 0 : index
    %c0_1 = arith.constant 0 : index
    %3 = vector.load %arg8[%c0, %c0_1] : memref<128x128xf32, #tpu.memory_space<vmem>>, vector<128x128xf32>
    %c0_2 = arith.constant 0 : index
    %c0_3 = arith.constant 0 : index
    %4 = vector.load %arg2[%c0_2, %c0_3] : memref<128x128xbf16, #tpu.memory_space<vmem>>, vector<128x128xbf16>
    %c0_4 = arith.constant 0 : index
    %c0_5 = arith.constant 0 : index
    %5 = vector.load %arg3[%c0_4, %c0_5] : memref<128x128xbf16, #tpu.memory_space<vmem>>, vector<128x128xbf16>
    %cst = arith.constant dense<0.000000e+00> : vector<128x128xf32>
    %6 = tpu.matmul %4, %5, %cst {dimension_numbers = #tpu.dot_dimension_numbers<[1], [0], [0], [1], [0, 0, 1, 1], [], []>} : vector<128x128xbf16>, vector<128x128xbf16>, vector<128x128xf32> -> vector<128x128xf32>
    %7 = arith.addf %3, %6 : vector<128x128xf32>
    %c0_6 = arith.constant 0 : index
    %c0_7 = arith.constant 0 : index
    %8 = vector.load %arg8[%c0_6, %c0_7] : memref<128x128xf32, #tpu.memory_space<vmem>>, vector<128x128xf32>
    tpu.vector_store %arg8[%c0_6, %c0_7], %7 {strides = array<i32>} : memref<128x128xf32, #tpu.memory_space<vmem>>, vector<128x128xf32>,
    %c1_i32 = arith.constant 1 : i32
    %9 = arith.cmpi eq, %arg1, %c1_i32 : i32
    %10 = arith.extui %9 : i1 to i32
    %c0_i32_8 = arith.constant 0 : i32
    %11 = arith.cmpi ne, %10, %c0_i32_8 : i32
    scf.if %11 {
      %c0_9 = arith.constant 0 : index
      %c0_10 = arith.constant 0 : index
      %12 = vector.load %arg4[%c0_9, %c0_10] : memref<128x128xbf16, #tpu.memory_space<vmem>>, vector<128x128xbf16>
      %c0_11 = arith.constant 0 : index
      %c0_12 = arith.constant 0 : index
      %13 = vector.load %arg8[%c0_11, %c0_12] : memref<128x128xf32, #tpu.memory_space<vmem>>, vector<128x128xf32>
      %14 = arith.truncf %13 : vector<128x128xf32> to vector<128x128xbf16>
      %15 = tpu.concatenate %12, %14 in 1 : vector<128x128xbf16>, vector<128x128xbf16> -> vector<128x256xbf16>
      %c0_13 = arith.constant 0 : index
      %c0_14 = arith.constant 0 : index
      %16 = vector.load %arg5[%c0_13, %c0_14] : memref<256x128xbf16, #tpu.memory_space<vmem>>, vector<256x128xbf16>
      %cst_15 = arith.constant dense<0.000000e+00> : vector<128x128xf32>
      %17 = tpu.matmul %15, %16, %cst_15 {dimension_numbers = #tpu.dot_dimension_numbers<[1], [0], [0], [1], [0, 0, 1, 1], [], []>} : vector<128x256xbf16>, vector<256x128xbf16>, vector<128x128xf32> -> vector<128x128xf32>
      %c0_16 = arith.constant 0 : index
      %c0_17 = arith.constant 0 : index
      %18 = vector.load %arg6[%c0_16, %c0_17] : memref<1x128xf32, #tpu.memory_space<vmem>>, vector<1x128xf32>
      %19 = vector.broadcast %18 : vector<1x128xf32> to vector<128x128xf32>
      %20 = arith.addf %17, %19 : vector<128x128xf32>
      %cst_18 = arith.constant 0.000000e+00 : f32
      %21 = vector.broadcast %cst_18 : f32 to vector<128x128xf32>
      %22 = arith.maximumf %20, %21 : vector<128x128xf32>
      %23 = arith.truncf %22 : vector<128x128xf32> to vector<128x128xbf16>
      %c0_19 = arith.constant 0 : index
      %c0_20 = arith.constant 0 : index
      %24 = vector.load %arg7[%c0_19, %c0_20] : memref<128x128xbf16, #tpu.memory_space<vmem>>, vector<128x128xbf16>
      tpu.vector_store %arg7[%c0_19, %c0_20], %23 {strides = array<i32>} : memref<128x128xbf16, #tpu.memory_space<vmem>>, vector<128x128xbf16>,
    } else {
    }
    return
  }
  func.func @transform_0(%arg0: i32, %arg1: i32) -> (i32, i32) {
    %c0_i32 = arith.constant 0 : i32
    return %arg0, %arg1 : i32, i32
  }
  func.func @transform_1(%arg0: i32, %arg1: i32) -> (i32, i32) {
    %c0_i32 = arith.constant 0 : i32
    %c0_i32_0 = arith.constant 0 : i32
    return %arg1, %c0_i32 : i32, i32
  }
  func.func @transform_2(%arg0: i32, %arg1: i32) -> (i32, i32) {
    %c0_i32 = arith.constant 0 : i32
    %c0_i32_0 = arith.constant 0 : i32
    return %arg0, %c0_i32 : i32, i32
  }
  func.func @transform_3(%arg0: i32, %arg1: i32) -> (i32, i32) {
    %c0_i32 = arith.constant 0 : i32
    %c0_i32_0 = arith.constant 0 : i32
    %c0_i32_1 = arith.constant 0 : i32
    return %c0_i32, %c0_i32_0 : i32, i32
  }
  func.func @transform_4(%arg0: i32, %arg1: i32) -> (i32, i32) {
    %c0_i32 = arith.constant 0 : i32
    %c0_i32_0 = arith.constant 0 : i32
    %c0_i32_1 = arith.constant 0 : i32
    return %c0_i32, %c0_i32_0 : i32, i32
  }
  func.func @transform_5(%arg0: i32, %arg1: i32) -> (i32, i32) {
    %c0_i32 = arith.constant 0 : i32
    %c0_i32_0 = arith.constant 0 : i32
    return %arg0, %c0_i32 : i32, i32
  }
}

</mosaic_0001>

<llo_original>
// kernel: tpu_custom_call.1
$region0: #{tpu_custom_call.1}
  #allocation0 [shape = 'u32[]', space=smem, size = 0x4, offset = 0x4, fixed_abs, tag = 'smem constant byte address 0x4 - core index']
  #allocation1 [shape = 'u32[72,128]{1,0:T(1,128)}', space=vmem, size = 0x9000, scoped, tag = 'internal scratch']
  #allocation2 [shape = 'f32[128,128]{1,0:T(8,128)}', space=vmem, size = 0x10000, scoped, tag = 'scratch operand']
  %s0 = inlined_call_operand.hbm [shape: bf16[256,256], index: 0, kind: input, shape index: {}]
  %s1 = inlined_call_operand.hbm [shape: bf16[256,128], index: 1, kind: input, shape index: {}]
  %s2 = inlined_call_operand.hbm [shape: bf16[256,128], index: 2, kind: input, shape index: {}]
  %s3 = inlined_call_operand.hbm [shape: bf16[256,128], index: 3, kind: input, shape index: {}]
  %s4 = inlined_call_operand.vmem [shape: f32[1,128], index: 4, kind: input, shape index: {}]
  %s5 = inlined_call_operand.hbm [shape: bf16[256,128], index: 5, kind: output, shape index: {}]
  %s6 = sld [smem:[#allocation0]]
  $region77: #{tpu_custom_call.1} parent=0
    _
  %s8 = ssub.s32 1, %s6
  %s9 = scalar_select 0, %s8, %s6
  $region1: #{tpu_custom_call.1} parent=0
    #allocation3 [shape = 'u8[65536]{0}', space=vmem, size = 0x10000, scoped, tag = 'input window, operand 0']
    #allocation4 [shape = 's32[2]{0}', space=sflag, size = 0x8, scoped, tag = 'scoped memory for tpu_custom_call.1']
    #allocation5 [shape = 's32[2]{0}', space=sflag, size = 0x8, scoped, tag = 'scoped memory for tpu_custom_call.1']
    #allocation6 [shape = 'u8[65536]{0}', space=vmem, size = 0x10000, scoped, tag = 'input window, operand 1']
    #allocation7 [shape = 's32[2]{0}', space=sflag, size = 0x8, scoped, tag = 'scoped memory for tpu_custom_call.1']
    #allocation8 [shape = 'u8[65536]{0}', space=vmem, size = 0x10000, scoped, tag = 'input window, operand 2']
    #allocation9 [shape = 'u8[65536]{0}', space=vmem, size = 0x10000, scoped, tag = 'input window, operand 3, single buffered']
    #allocation10 [shape = 's32[1]{0}', space=sflag, size = 0x4, scoped, tag = 'scoped memory for tpu_custom_call.1']
    #allocation11 [shape = 'u8[65536]{0}', space=vmem, size = 0x10000, scoped, tag = 'output window, operand 0']
    %10 = vsyncpa [#allocation4], 0
    %s11 = scalar_lea.sflag [#allocation4], 1
    %12 = vsyncpa %s11, 0
    %13 = vsyncpa [#allocation7], 0
    %s14 = scalar_lea.sflag [#allocation7], 1
    %15 = vsyncpa %s14, 0
    %16 = vsyncpa [#allocation10], 0
    %17 = vsyncpa [#allocation5], 0
    %s18 = scalar_lea.sflag [#allocation5], 1
    %19 = vsyncpa %s18, 0
    loop: start=0, step=1, limit=6
    $region2: #{tpu_custom_call.1} parent=1 // loop_pre_header
      _
    $region3: #{tpu_custom_call.1} parent=1 // loop_header
      %s21 = sphi 0, %s25
      %p22 = scmp.ge.s32.totalorder %s21, 6
      %s28 = sphi 0, %s40
      %s29 = sphi 0, %s36
      %s30 = sphi 0, %s28
      %s31 = sphi 0, %s29
      %s32 = sphi 0, %s30
      %s33 = sphi 0, %s31
      %s45 = sphi 0, %s47
      %s48 = sphi 0, %s45
      %s49 = sphi 0, %s48
      %s65 = sphi 0, %s49
      %s71 = sphi 0, %s73
      %s74 = sphi 0, %s71
      %s75 = sphi 0, %s74
      %s91 = sphi 0, %s75
      %s97 = sphi 0, %s99
      %s100 = sphi 0, %s97
      %s101 = sphi 0, %s100
      %s117 = sphi 0, %s101
      %s121 = sphi 0, %s121
      %s123 = sphi 0, %s121
      %s124 = sphi 0, %s123
      %s138 = sphi 0, %s124
      %s142 = sphi 0, %s142
      %s144 = sphi 0, %s142
      %s145 = sphi 0, %s144
      %s159 = sphi 0, %s145
      %s165 = sphi 0, %s167
      %s168 = sphi 0, %s165
      %s169 = sphi 0, %s168
      %s185 = sphi 0, %s169
    $region4: #{tpu_custom_call.1} parent=1 // loop_header_branch
      %24 = sbr.rel (%p22) target = $region8
    $region5: #{tpu_custom_call.1} parent=1 // loop_body
      %s26 = ssub.s32 %s21, 1
      %s27 = ssub.s32 %s21, 2
      %s34 = sadd.s32 1, %s29
      %p35 = scmp.ge.s32.totalorder %s34, 2
      %s36 = scalar_select %p35, 0, %s34
      %s37 = sadd.s32 1, %s28
      %s38 = scalar_select %p35, %s37, %s28
      %p39 = scmp.ge.s32.totalorder %s38, 2
      %s40 = scalar_select %p39, 0, %s38
      %s41 = ssub.s32 %s28, %s40
      %s42 = ssub.s32 %s29, %s36
      %s43 = sor.u32 %s41, %s42
      %p44 = scmp.eq.s32.totalorder %s43, 0
      %s46 = sadd.s32 %s45, 1
      %s47 = scalar_select %p44, %s45, %s46
      %p50 = pneg %p44
      %p51 = scmp.eq.s32.totalorder %s21, 3
      %p52 = por %p50, %p51
      %p53 = scmp.ne.s32.totalorder %s45, %s48
      %p54 = scmp.eq.s32.totalorder %s21, 0
      %p55 = por %p53, %p54
      %p56 = scmp.ne.s32.totalorder %s45, %s48
      %p57 = scmp.eq.s32.totalorder %s26, 3
      %p58 = por %p56, %p57
      %p59 = scmp.ne.s32.totalorder %s48, %s49
      %p60 = scmp.eq.s32.totalorder %s26, 0
      %p61 = por %p59, %p60
      %p62 = scmp.ne.s32.totalorder %s48, %s49
      %p63 = scmp.eq.s32.totalorder %s27, 3
      %p64 = por %p62, %p63
      %p66 = scmp.ne.s32.totalorder %s49, %s65
      %p67 = scmp.eq.s32.totalorder %s27, 0
      %p68 = por %p66, %p67
      %s69 = ssub.s32 %s29, %s36
      %p70 = scmp.eq.s32.totalorder %s69, 0
      %s72 = sadd.s32 %s71, 1
      %s73 = scalar_select %p70, %s71, %s72
      %p76 = pneg %p70
      %p77 = scmp.eq.s32.totalorder %s21, 3
      %p78 = por %p76, %p77
      %p79 = scmp.ne.s32.totalorder %s71, %s74
      %p80 = scmp.eq.s32.totalorder %s21, 0
      %p81 = por %p79, %p80
      %p82 = scmp.ne.s32.totalorder %s71, %s74
      %p83 = scmp.eq.s32.totalorder %s26, 3
      %p84 = por %p82, %p83
      %p85 = scmp.ne.s32.totalorder %s74, %s75
      %p86 = scmp.eq.s32.totalorder %s26, 0
      %p87 = por %p85, %p86
      %p88 = scmp.ne.s32.totalorder %s74, %s75
      %p89 = scmp.eq.s32.totalorder %s27, 3
      %p90 = por %p88, %p89
      %p92 = scmp.ne.s32.totalorder %s75, %s91
      %p93 = scmp.eq.s32.totalorder %s27, 0
      %p94 = por %p92, %p93
      %s95 = ssub.s32 %s28, %s40
      %p96 = scmp.eq.s32.totalorder %s95, 0
      %s98 = sadd.s32 %s97, 1
      %s99 = scalar_select %p96, %s97, %s98
      %p102 = pneg %p96
      %p103 = scmp.eq.s32.totalorder %s21, 3
      %p104 = por %p102, %p103
      %p105 = scmp.ne.s32.totalorder %s97, %s100
      %p106 = scmp.eq.s32.totalorder %s21, 0
      %p107 = por %p105, %p106
      %p108 = scmp.ne.s32.totalorder %s97, %s100
      %p109 = scmp.eq.s32.totalorder %s26, 3
      %p110 = por %p108, %p109
      %p111 = scmp.ne.s32.totalorder %s100, %s101
      %p112 = scmp.eq.s32.totalorder %s26, 0
      %p113 = por %p111, %p112
      %p114 = scmp.ne.s32.totalorder %s100, %s101
      %p115 = scmp.eq.s32.totalorder %s27, 3
      %p116 = por %p114, %p115
      %p118 = scmp.ne.s32.totalorder %s101, %s117
      %p119 = scmp.eq.s32.totalorder %s27, 0
      %p120 = por %p118, %p119
      %s122 = sadd.s32 %s121, 1
      %p125 = scmp.eq.s32.totalorder %s21, 3
      %p126 = scmp.ne.s32.totalorder %s121, %s123
      %p127 = scmp.eq.s32.totalorder %s21, 0
      %p128 = por %p126, %p127
      %p129 = scmp.ne.s32.totalorder %s121, %s123
      %p130 = scmp.eq.s32.totalorder %s26, 3
      %p131 = por %p129, %p130
      %p132 = scmp.ne.s32.totalorder %s123, %s124
      %p133 = scmp.eq.s32.totalorder %s26, 0
      %p134 = por %p132, %p133
      %p135 = scmp.ne.s32.totalorder %s123, %s124
      %p136 = scmp.eq.s32.totalorder %s27, 3
      %p137 = por %p135, %p136
      %p139 = scmp.ne.s32.totalorder %s124, %s138
      %p140 = scmp.eq.s32.totalorder %s27, 0
      %p141 = por %p139, %p140
      %s143 = sadd.s32 %s142, 1
      %p146 = scmp.eq.s32.totalorder %s21, 3
      %p147 = scmp.ne.s32.totalorder %s142, %s144
      %p148 = scmp.eq.s32.totalorder %s21, 0
      %p149 = por %p147, %p148
      %p150 = scmp.ne.s32.totalorder %s142, %s144
      %p151 = scmp.eq.s32.totalorder %s26, 3
      %p152 = por %p150, %p151
      %p153 = scmp.ne.s32.totalorder %s144, %s145
      %p154 = scmp.eq.s32.totalorder %s26, 0
      %p155 = por %p153, %p154
      %p156 = scmp.ne.s32.totalorder %s144, %s145
      %p157 = scmp.eq.s32.totalorder %s27, 3
      %p158 = por %p156, %p157
      %p160 = scmp.ne.s32.totalorder %s145, %s159
      %p161 = scmp.eq.s32.totalorder %s27, 0
      %p162 = por %p160, %p161
      %s163 = ssub.s32 %s28, %s40
      %p164 = scmp.eq.s32.totalorder %s163, 0
      %s166 = sadd.s32 %s165, 1
      %s167 = scalar_select %p164, %s165, %s166
      %p170 = pneg %p164
      %p171 = scmp.eq.s32.totalorder %s21, 3
      %p172 = por %p170, %p171
      %p173 = scmp.ne.s32.totalorder %s165, %s168
      %p174 = scmp.eq.s32.totalorder %s21, 0
      %p175 = por %p173, %p174
      %p176 = scmp.ne.s32.totalorder %s165, %s168
      %p177 = scmp.eq.s32.totalorder %s26, 3
      %p178 = por %p176, %p177
      %p179 = scmp.ne.s32.totalorder %s168, %s169
      %p180 = scmp.eq.s32.totalorder %s26, 0
      %p181 = por %p179, %p180
      %p182 = scmp.ne.s32.totalorder %s168, %s169
      %p183 = scmp.eq.s32.totalorder %s27, 3
      %p184 = por %p182, %p183
      %p186 = scmp.ne.s32.totalorder %s169, %s185
      %p187 = scmp.eq.s32.totalorder %s27, 0
      %p188 = por %p186, %p187
      %p189 = scmp.le.s32.totalorder 1, %s21
      %p190 = scmp.lt.s32.totalorder %s21, 5
      %p191 = pnand %p189, %p190
      %p192 = pneg %p191
      // Predicated region
      $region9: #{tpu_custom_call.1} parent=5 // pred_check
        _
      $region10: #{tpu_custom_call.1} parent=5 // pred_check_branch
        %194 = sbr.rel (%p191) target = $region12
      $region11: #{tpu_custom_call.1} parent=5 // pred_region
        %s195 = ssub.s32 %s21, 1
        // Predicated region
        $region13: #{tpu_custom_call.1} parent=11 // pred_check
          %p196 = pneg %p134
        $region14: #{tpu_custom_call.1} parent=11 // pred_check_branch
          %198 = sbr.rel (%p196) target = $region16
        $region15: #{tpu_custom_call.1} parent=11 // pred_region
          %200 = vsyncadd [#allocation10], 0
          %s201 = sshll.u32 %s3, 4
          %s202 = int_to_ptr.hbm [resolvable:$true] %s201
          %s203 = sshll.u32 [#allocation9], 4
          %s204 = int_to_ptr.vmem [resolvable:$true] %s203
          %209 = dma.hbm_to_vmem [thread:$0]  %s202, 2048, %s204, [#allocation10], 64, 64, 4
        $region16: #{tpu_custom_call.1} parent=11 // pred_fallthru
          _
        // Predicated region
        $region17: #{tpu_custom_call.1} parent=11 // pred_check
          %p210 = pneg %p155
        $region18: #{tpu_custom_call.1} parent=11 // pred_check_branch
          %212 = sbr.rel (%p210) target = $region20
        $region19: #{tpu_custom_call.1} parent=11 // pred_region
          _
        $region20: #{tpu_custom_call.1} parent=11 // pred_fallthru
          _
      $region12: #{tpu_custom_call.1} parent=5 // pred_fallthru
        _
      %p213 = scmp.lt.s32.totalorder %s21, 4
      // Predicated region
      $region21: #{tpu_custom_call.1} parent=5 // pred_check
        %p214 = pneg %p213
      $region22: #{tpu_custom_call.1} parent=5 // pred_check_branch
        %216 = sbr.rel (%p214) target = $region24
      $region23: #{tpu_custom_call.1} parent=5 // pred_region
        // Predicated region
        $region25: #{tpu_custom_call.1} parent=23 // pred_check
          %p217 = pneg %p55
        $region26: #{tpu_custom_call.1} parent=23 // pred_check_branch
          %219 = sbr.rel (%p217) target = $region28
        $region27: #{tpu_custom_call.1} parent=23 // pred_region
          %s220 = sand.u32 %s45, 1
          %s221 = scalar_lea.sflag [#allocation4], %s220
          %s222 = sand.u32 %s45, 1
          %s223 = smul.addr %s222, 64
          %s224 = scalar_lea.vmem [#allocation3], %s223
          %s225 = smul.u32 16, %s28
          %227 = vsyncadd %s221, 0
          %s228 = smul.addr %s225, 2
          %s229 = sadd.s32 %s29, %s228
          %s230 = smul.addr %s229, 4
          %s231 = scalar_lea.hbm %s0, %s230
          %s232 = sshll.u32 %s231, 4
          %s233 = int_to_ptr.hbm [resolvable:$true] %s232
          %s234 = sshll.u32 %s224, 4
          %s235 = int_to_ptr.vmem [resolvable:$true] %s234
          %240 = dma.hbm_to_vmem [thread:$0]  %s233, 1024, %s235, %s221, 128, 64, 4
        $region28: #{tpu_custom_call.1} parent=23 // pred_fallthru
          _
        // Predicated region
        $region29: #{tpu_custom_call.1} parent=23 // pred_check
          %p241 = pneg %p81
        $region30: #{tpu_custom_call.1} parent=23 // pred_check_branch
          %243 = sbr.rel (%p241) target = $region32
        $region31: #{tpu_custom_call.1} parent=23 // pred_region
          %s244 = sand.u32 %s21, 1
          %s245 = scalar_lea.sflag [#allocation7], %s244
          %s246 = sand.u32 %s71, 1
          %s247 = smul.addr %s246, 64
          %s248 = scalar_lea.vmem [#allocation6], %s247
          %s249 = smul.u32 16, %s29
          %251 = vsyncadd %s245, 0
          %s252 = smul.addr %s249, 4
          %s253 = scalar_lea.hbm %s1, %s252
          %s254 = sshll.u32 %s253, 4
          %s255 = int_to_ptr.hbm [resolvable:$true] %s254
          %s256 = sshll.u32 %s248, 4
          %s257 = int_to_ptr.vmem [resolvable:$true] %s256
          %262 = dma.hbm_to_vmem [thread:$0]  %s255, 1024, %s257, %s245, 64, 64, 4
        $region32: #{tpu_custom_call.1} parent=23 // pred_fallthru
          _
        // Predicated region
        $region33: #{tpu_custom_call.1} parent=23 // pred_check
          %p263 = pneg %p107
        $region34: #{tpu_custom_call.1} parent=23 // pred_check_branch
          %265 = sbr.rel (%p263) target = $region36
        $region35: #{tpu_custom_call.1} parent=23 // pred_region
          %s266 = sand.u32 %s21, 1
          %s267 = scalar_lea.sflag [#allocation7], %s266
          %s268 = sand.u32 %s97, 1
          %s269 = smul.addr %s268, 64
          %s270 = scalar_lea.vmem [#allocation8], %s269
          %s271 = smul.u32 16, %s28
          %273 = vsyncadd %s267, 0
          %s274 = smul.addr %s271, 4
          %s275 = scalar_lea.hbm %s2, %s274
          %s276 = sshll.u32 %s275, 4
          %s277 = int_to_ptr.hbm [resolvable:$true] %s276
          %s278 = sshll.u32 %s270, 4
          %s279 = int_to_ptr.vmem [resolvable:$true] %s278
          %284 = dma.hbm_to_vmem [thread:$0]  %s277, 1024, %s279, %s267, 64, 64, 4
        $region36: #{tpu_custom_call.1} parent=23 // pred_fallthru
          _
      $region24: #{tpu_custom_call.1} parent=5 // pred_fallthru
        _
      %p285 = scmp.le.s32.totalorder 1, %s21
      %p286 = scmp.lt.s32.totalorder %s21, 5
      %p287 = pnand %p285, %p286
      %p288 = pneg %p287
      // Predicated region
      $region37: #{tpu_custom_call.1} parent=5 // pred_check
        _
      $region38: #{tpu_custom_call.1} parent=5 // pred_check_branch
        %290 = sbr.rel (%p287) target = $region40
      $region39: #{tpu_custom_call.1} parent=5 // pred_region
        %s291 = ssub.s32 %s21, 1
        %s292 = sand.u32 %s48, 1
        %s293 = scalar_lea.sflag [#allocation4], %s292
        %s294 = sand.u32 %s48, 1
        %s295 = smul.addr %s294, 64
        %s296 = scalar_lea.vmem [#allocation3], %s295
        // Predicated region
        $region41: #{tpu_custom_call.1} parent=39 // pred_check
          %p297 = pneg %p61
        $region42: #{tpu_custom_call.1} parent=39 // pred_check_branch
          %299 = sbr.rel (%p297) target = $region44
        $region43: #{tpu_custom_call.1} parent=39 // pred_region
          %301 = dma.done %s293, 1024
        $region44: #{tpu_custom_call.1} parent=39 // pred_fallthru
          _
        %s302 = sand.u32 %s26, 1
        %s303 = scalar_lea.sflag [#allocation7], %s302
        %s304 = sand.u32 %s74, 1
        %s305 = smul.addr %s304, 64
        %s306 = scalar_lea.vmem [#allocation6], %s305
        // Predicated region
        $region45: #{tpu_custom_call.1} parent=39 // pred_check
          %p307 = pneg %p87
        $region46: #{tpu_custom_call.1} parent=39 // pred_check_branch
          %309 = sbr.rel (%p307) target = $region48
        $region47: #{tpu_custom_call.1} parent=39 // pred_region
          %311 = dma.done %s303, 1024
        $region48: #{tpu_custom_call.1} parent=39 // pred_fallthru
          _
        %s312 = sand.u32 %s26, 1
        %s313 = scalar_lea.sflag [#allocation7], %s312
        %s314 = sand.u32 %s100, 1
        %s315 = smul.addr %s314, 64
        %s316 = scalar_lea.vmem [#allocation8], %s315
        // Predicated region
        $region49: #{tpu_custom_call.1} parent=39 // pred_check
          %p317 = pneg %p113
        $region50: #{tpu_custom_call.1} parent=39 // pred_check_branch
          %319 = sbr.rel (%p317) target = $region52
        $region51: #{tpu_custom_call.1} parent=39 // pred_region
          %321 = dma.done %s313, 1024
        $region52: #{tpu_custom_call.1} parent=39 // pred_fallthru
          _
        // Predicated region
        $region53: #{tpu_custom_call.1} parent=39 // pred_check
          %p322 = pneg %p134
        $region54: #{tpu_custom_call.1} parent=39 // pred_check_branch
          %324 = sbr.rel (%p322) target = $region56
        $region55: #{tpu_custom_call.1} parent=39 // pred_region
          %326 = dma.done [#allocation10], 2048
        $region56: #{tpu_custom_call.1} parent=39 // pred_fallthru
          _
        %s327 = sand.u32 %s48, 1
        %s328 = scalar_lea.sflag [#allocation4], %s327
        %s329 = sand.u32 %s48, 1
        %s330 = smul.addr %s329, 64
        %s331 = scalar_lea.vmem [#allocation3], %s330
        %p332 = pneg %p61
        %p333 = pneg %p58
        %s334 = sand.u32 %s26, 1
        %s335 = scalar_lea.sflag [#allocation7], %s334
        %s336 = sand.u32 %s74, 1
        %s337 = smul.addr %s336, 64
        %s338 = scalar_lea.vmem [#allocation6], %s337
        %p339 = pneg %p87
        %p340 = pneg %p84
        %s341 = sand.u32 %s26, 1
        %s342 = scalar_lea.sflag [#allocation7], %s341
        %s343 = sand.u32 %s100, 1
        %s344 = smul.addr %s343, 64
        %s345 = scalar_lea.vmem [#allocation8], %s344
        %p346 = pneg %p113
        %p347 = pneg %p110
        %p348 = pneg %p134
        %p349 = pneg %p131
        %p350 = pneg %p155
        %p351 = pneg %p152
        %p352 = pneg %p181
        %p353 = pneg %p178
        %s354 = sand.u32 %s168, 1
        %s355 = scalar_lea.sflag [#allocation5], %s354
        %s356 = sand.u32 %s168, 1
        %s357 = smul.addr %s356, 64
        %s358 = scalar_lea.vmem [#allocation11], %s357
        %s359 = smul.u32 16, %s30
        %s360 = smul.u32 16, %s31
        %s361 = smul.u32 16, %s30
        %s362 = smul.u32 16, %s30
        %p363 = scmp.eq.s32.totalorder %s31, 0
        // Predicated region
        $region57: #{tpu_custom_call.1} parent=39 // pred_check
          %p364 = pneg %p363
        $region58: #{tpu_custom_call.1} parent=39 // pred_check_branch
          %366 = sbr.rel (%p364) target = $region60
        $region59: #{tpu_custom_call.1} parent=39 // pred_region
          %367 = vst [vmem:[#allocation2] sm:$0xff] 0.0
          %368 = vst [vmem:[#allocation2 + $0x8] sm:$0xff] 0.0
          %369 = vst [vmem:[#allocation2 + $0x10] sm:$0xff] 0.0
          %370 = vst [vmem:[#allocation2 + $0x18] sm:$0xff] 0.0
          %371 = vst [vmem:[#allocation2 + $0x20] sm:$0xff] 0.0
          %372 = vst [vmem:[#allocation2 + $0x28] sm:$0xff] 0.0
          %373 = vst [vmem:[#allocation2 + $0x30] sm:$0xff] 0.0
          %374 = vst [vmem:[#allocation2 + $0x38] sm:$0xff] 0.0
          %375 = vst [vmem:[#allocation2 + $0x40] sm:$0xff] 0.0
          %376 = vst [vmem:[#allocation2 + $0x48] sm:$0xff] 0.0
          %377 = vst [vmem:[#allocation2 + $0x50] sm:$0xff] 0.0
          %378 = vst [vmem:[#allocation2 + $0x58] sm:$0xff] 0.0
          %379 = vst [vmem:[#allocation2 + $0x60] sm:$0xff] 0.0
          %380 = vst [vmem:[#allocation2 + $0x68] sm:$0xff] 0.0
          %381 = vst [vmem:[#allocation2 + $0x70] sm:$0xff] 0.0
          %382 = vst [vmem:[#allocation2 + $0x78] sm:$0xff] 0.0
        $region60: #{tpu_custom_call.1} parent=39 // pred_fallthru
          _
        %v383 = vld [vmem:[#allocation2] sm:$0xff]
        %v384 = vld [vmem:[#allocation2 + $0x8] sm:$0xff]
        %v385 = vld [vmem:[#allocation2 + $0x10] sm:$0xff]
        %v386 = vld [vmem:[#allocation2 + $0x18] sm:$0xff]
        %v387 = vld [vmem:[#allocation2 + $0x20] sm:$0xff]
        %v388 = vld [vmem:[#allocation2 + $0x28] sm:$0xff]
        %v389 = vld [vmem:[#allocation2 + $0x30] sm:$0xff]
        %v390 = vld [vmem:[#allocation2 + $0x38] sm:$0xff]
        %v391 = vld [vmem:[#allocation2 + $0x40] sm:$0xff]
        %v392 = vld [vmem:[#allocation2 + $0x48] sm:$0xff]
        %v393 = vld [vmem:[#allocation2 + $0x50] sm:$0xff]
        %v394 = vld [vmem:[#allocation2 + $0x58] sm:$0xff]
        %v395 = vld [vmem:[#allocation2 + $0x60] sm:$0xff]
        %v396 = vld [vmem:[#allocation2 + $0x68] sm:$0xff]
        %v397 = vld [vmem:[#allocation2 + $0x70] sm:$0xff]
        %v398 = vld [vmem:[#allocation2 + $0x78] sm:$0xff]
        %v399 = vld [vmem:[%s296] sm:$0xf]
        %v400 = vld [vmem:[%s296 + $0x4] sm:$0xf]
        %v401 = vld [vmem:[%s296 + $0x8] sm:$0xf]
        %v402 = vld [vmem:[%s296 + $0xc] sm:$0xf]
        %v403 = vld [vmem:[%s296 + $0x10] sm:$0xf]
        %v404 = vld [vmem:[%s296 + $0x14] sm:$0xf]
        %v405 = vld [vmem:[%s296 + $0x18] sm:$0xf]
        %v406 = vld [vmem:[%s296 + $0x1c] sm:$0xf]
        %v407 = vld [vmem:[%s296 + $0x20] sm:$0xf]
        %v408 = vld [vmem:[%s296 + $0x24] sm:$0xf]
        %v409 = vld [vmem:[%s296 + $0x28] sm:$0xf]
        %v410 = vld [vmem:[%s296 + $0x2c] sm:$0xf]
        %v411 = vld [vmem:[%s296 + $0x30] sm:$0xf]
        %v412 = vld [vmem:[%s296 + $0x34] sm:$0xf]
        %v413 = vld [vmem:[%s296 + $0x38] sm:$0xf]
        %v414 = vld [vmem:[%s296 + $0x3c] sm:$0xf]
        %v415 = vld [vmem:[%s306] sm:$0xf]
        %v416 = vld [vmem:[%s306 + $0x4] sm:$0xf]
        %v417 = vld [vmem:[%s306 + $0x8] sm:$0xf]
        %v418 = vld [vmem:[%s306 + $0xc] sm:$0xf]
        %v419 = vld [vmem:[%s306 + $0x10] sm:$0xf]
        %v420 = vld [vmem:[%s306 + $0x14] sm:$0xf]
        %v421 = vld [vmem:[%s306 + $0x18] sm:$0xf]
        %v422 = vld [vmem:[%s306 + $0x1c] sm:$0xf]
        %v423 = vld [vmem:[%s306 + $0x20] sm:$0xf]
        %v424 = vld [vmem:[%s306 + $0x24] sm:$0xf]
        %v425 = vld [vmem:[%s306 + $0x28] sm:$0xf]
        %v426 = vld [vmem:[%s306 + $0x2c] sm:$0xf]
        %v427 = vld [vmem:[%s306 + $0x30] sm:$0xf]
        %v428 = vld [vmem:[%s306 + $0x34] sm:$0xf]
        %v429 = vld [vmem:[%s306 + $0x38] sm:$0xf]
        %v430 = vld [vmem:[%s306 + $0x3c] sm:$0xf]
        %v447 = vunpack.c.l.b16 %v399
        %v448 = vunpack.c.l.b16 %v400
        %v449 = vunpack.c.l.b16 %v401
        %v450 = vunpack.c.l.b16 %v402
        %v451 = vunpack.c.l.b16 %v403
        %v452 = vunpack.c.l.b16 %v404
        %v453 = vunpack.c.l.b16 %v405
        %v454 = vunpack.c.l.b16 %v406
        %v455 = vunpack.c.l.b16 %v407
        %v456 = vunpack.c.l.b16 %v408
        %v457 = vunpack.c.l.b16 %v409
        %v458 = vunpack.c.l.b16 %v410
        %v459 = vunpack.c.l.b16 %v411
        %v460 = vunpack.c.l.b16 %v412
        %v461 = vunpack.c.l.b16 %v413
        %v462 = vunpack.c.l.b16 %v414
        %v463 = vpack.c.b16 %v448, %v447
        %v464 = vpack.c.b16 %v450, %v449
        %v465 = vpack.c.b16 %v452, %v451
        %v466 = vpack.c.b16 %v454, %v453
        %v467 = vpack.c.b16 %v456, %v455
        %v468 = vpack.c.b16 %v458, %v457
        %v469 = vpack.c.b16 %v460, %v459
        %v470 = vpack.c.b16 %v462, %v461
        %v495 = vunpack.c.l.b16 %v415
        %v496 = vunpack.c.l.b16 %v416
        %v497 = vunpack.c.l.b16 %v417
        %v498 = vunpack.c.l.b16 %v418
        %v499 = vunpack.c.l.b16 %v419
        %v500 = vunpack.c.l.b16 %v420
        %v501 = vunpack.c.l.b16 %v421
        %v502 = vunpack.c.l.b16 %v422
        %v503 = vunpack.c.l.b16 %v423
        %v504 = vunpack.c.l.b16 %v424
        %v505 = vunpack.c.l.b16 %v425
        %v506 = vunpack.c.l.b16 %v426
        %v507 = vunpack.c.l.b16 %v427
        %v508 = vunpack.c.l.b16 %v428
        %v509 = vunpack.c.l.b16 %v429
        %v510 = vunpack.c.l.b16 %v430
        %v511 = vpack.c.b16 %v496, %v495
        %v512 = vpack.c.b16 %v498, %v497
        %v513 = vpack.c.b16 %v500, %v499
        %v514 = vpack.c.b16 %v502, %v501
        %v515 = vpack.c.b16 %v504, %v503
        %v516 = vpack.c.b16 %v506, %v505
        %v517 = vpack.c.b16 %v508, %v507
        %v518 = vpack.c.b16 %v510, %v509
        %527 = vmatpush.bf16.msra.mxu0 %v518
        %528 = vmatpush.bf16.msra.mxu0 %v517
        %529 = vmatpush.bf16.msra.mxu0 %v516
        %530 = vmatpush.bf16.msra.mxu0 %v515
        %531 = vmatpush.bf16.msra.mxu0 %v514
        %532 = vmatpush.bf16.msra.mxu0 %v513
        %533 = vmatpush.bf16.msra.mxu0 %v512
        %534 = vmatpush.bf16.msra.mxu0 %v511
        %535 = vmatmul.bf16.gmra.mxu0 %v463
        %v536 = vpop.f32.mrf.mxu0
        %v537 = vadd.f32 0.0, %v536
        %v538 = vpop.f32.mrf.mxu0
        %v539 = vadd.f32 0.0, %v538
        %540 = vmatmul.bf16.gmra.mxu0 %v464
        %v541 = vpop.f32.mrf.mxu0
        %v542 = vadd.f32 0.0, %v541
        %v543 = vpop.f32.mrf.mxu0
        %v544 = vadd.f32 0.0, %v543
        %545 = vmatmul.bf16.gmra.mxu0 %v465
        %v546 = vpop.f32.mrf.mxu0
        %v547 = vadd.f32 0.0, %v546
        %v548 = vpop.f32.mrf.mxu0
        %v549 = vadd.f32 0.0, %v548
        %550 = vmatmul.bf16.gmra.mxu0 %v466
        %v551 = vpop.f32.mrf.mxu0
        %v552 = vadd.f32 0.0, %v551
        %v553 = vpop.f32.mrf.mxu0
        %v554 = vadd.f32 0.0, %v553
        %555 = vmatmul.bf16.gmra.mxu0 %v467
        %v556 = vpop.f32.mrf.mxu0
        %v557 = vadd.f32 0.0, %v556
        %v558 = vpop.f32.mrf.mxu0
        %v559 = vadd.f32 0.0, %v558
        %560 = vmatmul.bf16.gmra.mxu0 %v468
        %v561 = vpop.f32.mrf.mxu0
        %v562 = vadd.f32 0.0, %v561
        %v563 = vpop.f32.mrf.mxu0
        %v564 = vadd.f32 0.0, %v563
        %565 = vmatmul.bf16.gmra.mxu0 %v469
        %v566 = vpop.f32.mrf.mxu0
        %v567 = vadd.f32 0.0, %v566
        %v568 = vpop.f32.mrf.mxu0
        %v569 = vadd.f32 0.0, %v568
        %570 = vmatmul.bf16.gmra.mxu0 %v470
        %v571 = vpop.f32.mrf.mxu0
        %v572 = vadd.f32 0.0, %v571
        %v573 = vpop.f32.mrf.mxu0
        %v574 = vadd.f32 0.0, %v573
        %575 = vdwg.mxu0
        %v576 = vadd.f32 %v383, %v537
        %v577 = vadd.f32 %v384, %v539
        %v578 = vadd.f32 %v385, %v542
        %v579 = vadd.f32 %v386, %v544
        %v580 = vadd.f32 %v387, %v547
        %v581 = vadd.f32 %v388, %v549
        %v582 = vadd.f32 %v389, %v552
        %v583 = vadd.f32 %v390, %v554
        %v584 = vadd.f32 %v391, %v557
        %v585 = vadd.f32 %v392, %v559
        %v586 = vadd.f32 %v393, %v562
        %v587 = vadd.f32 %v394, %v564
        %v588 = vadd.f32 %v395, %v567
        %v589 = vadd.f32 %v396, %v569
        %v590 = vadd.f32 %v397, %v572
        %v591 = vadd.f32 %v398, %v574
        %592 = vst [vmem:[#allocation2] sm:$0xff] %v576
        %593 = vst [vmem:[#allocation2 + $0x8] sm:$0xff] %v577
        %594 = vst [vmem:[#allocation2 + $0x10] sm:$0xff] %v578
        %595 = vst [vmem:[#allocation2 + $0x18] sm:$0xff] %v579
        %596 = vst [vmem:[#allocation2 + $0x20] sm:$0xff] %v580
        %597 = vst [vmem:[#allocation2 + $0x28] sm:$0xff] %v581
        %598 = vst [vmem:[#allocation2 + $0x30] sm:$0xff] %v582
        %599 = vst [vmem:[#allocation2 + $0x38] sm:$0xff] %v583
        %600 = vst [vmem:[#allocation2 + $0x40] sm:$0xff] %v584
        %601 = vst [vmem:[#allocation2 + $0x48] sm:$0xff] %v585
        %602 = vst [vmem:[#allocation2 + $0x50] sm:$0xff] %v586
        %603 = vst [vmem:[#allocation2 + $0x58] sm:$0xff] %v587
        %604 = vst [vmem:[#allocation2 + $0x60] sm:$0xff] %v588
        %605 = vst [vmem:[#allocation2 + $0x68] sm:$0xff] %v589
        %606 = vst [vmem:[#allocation2 + $0x70] sm:$0xff] %v590
        %607 = vst [vmem:[#allocation2 + $0x78] sm:$0xff] %v591
        %p608 = scmp.eq.s32.totalorder %s31, 1
        // Predicated region
        $region61: #{tpu_custom_call.1} parent=39 // pred_check
          %p609 = pneg %p608
        $region62: #{tpu_custom_call.1} parent=39 // pred_check_branch
          %611 = sbr.rel (%p609) target = $region64
        $region63: #{tpu_custom_call.1} parent=39 // pred_region
          %v612 = vld [vmem:[%s316] sm:$0xf]
          %v613 = vld [vmem:[%s316 + $0x4] sm:$0xf]
          %v614 = vld [vmem:[%s316 + $0x8] sm:$0xf]
          %v615 = vld [vmem:[%s316 + $0xc] sm:$0xf]
          %v616 = vld [vmem:[%s316 + $0x10] sm:$0xf]
          %v617 = vld [vmem:[%s316 + $0x14] sm:$0xf]
          %v618 = vld [vmem:[%s316 + $0x18] sm:$0xf]
          %v619 = vld [vmem:[%s316 + $0x1c] sm:$0xf]
          %v620 = vld [vmem:[%s316 + $0x20] sm:$0xf]
          %v621 = vld [vmem:[%s316 + $0x24] sm:$0xf]
          %v622 = vld [vmem:[%s316 + $0x28] sm:$0xf]
          %v623 = vld [vmem:[%s316 + $0x2c] sm:$0xf]
          %v624 = vld [vmem:[%s316 + $0x30] sm:$0xf]
          %v625 = vld [vmem:[%s316 + $0x34] sm:$0xf]
          %v626 = vld [vmem:[%s316 + $0x38] sm:$0xf]
          %v627 = vld [vmem:[%s316 + $0x3c] sm:$0xf]
          %v628 = vld [vmem:[#allocation2] sm:$0xff]
          %v629 = vld [vmem:[#allocation2 + $0x8] sm:$0xff]
          %v630 = vld [vmem:[#allocation2 + $0x10] sm:$0xff]
          %v631 = vld [vmem:[#allocation2 + $0x18] sm:$0xff]
          %v632 = vld [vmem:[#allocation2 + $0x20] sm:$0xff]
          %v633 = vld [vmem:[#allocation2 + $0x28] sm:$0xff]
          %v634 = vld [vmem:[#allocation2 + $0x30] sm:$0xff]
          %v635 = vld [vmem:[#allocation2 + $0x38] sm:$0xff]
          %v636 = vld [vmem:[#allocation2 + $0x40] sm:$0xff]
          %v637 = vld [vmem:[#allocation2 + $0x48] sm:$0xff]
          %v638 = vld [vmem:[#allocation2 + $0x50] sm:$0xff]
          %v639 = vld [vmem:[#allocation2 + $0x58] sm:$0xff]
          %v640 = vld [vmem:[#allocation2 + $0x60] sm:$0xff]
          %v641 = vld [vmem:[#allocation2 + $0x68] sm:$0xff]
          %v642 = vld [vmem:[#allocation2 + $0x70] sm:$0xff]
          %v643 = vld [vmem:[#allocation2 + $0x78] sm:$0xff]
          %v644 = vpack.c.bf16 %v628, %v628
          %v645 = vpack.c.bf16 %v629, %v629
          %v646 = vpack.c.bf16 %v630, %v630
          %v647 = vpack.c.bf16 %v631, %v631
          %v648 = vpack.c.bf16 %v632, %v632
          %v649 = vpack.c.bf16 %v633, %v633
          %v650 = vpack.c.bf16 %v634, %v634
          %v651 = vpack.c.bf16 %v635, %v635
          %v652 = vpack.c.bf16 %v636, %v636
          %v653 = vpack.c.bf16 %v637, %v637
          %v654 = vpack.c.bf16 %v638, %v638
          %v655 = vpack.c.bf16 %v639, %v639
          %v656 = vpack.c.bf16 %v640, %v640
          %v657 = vpack.c.bf16 %v641, %v641
          %v658 = vpack.c.bf16 %v642, %v642
          %v659 = vpack.c.bf16 %v643, %v643
          %v676 = vunpack.c.l.b16 %v612
          %v677 = vunpack.c.l.b16 %v613
          %v678 = vunpack.c.l.b16 %v614
          %v679 = vunpack.c.l.b16 %v615
          %v680 = vunpack.c.l.b16 %v616
          %v681 = vunpack.c.l.b16 %v617
          %v682 = vunpack.c.l.b16 %v618
          %v683 = vunpack.c.l.b16 %v619
          %v684 = vunpack.c.l.b16 %v620
          %v685 = vunpack.c.l.b16 %v621
          %v686 = vunpack.c.l.b16 %v622
          %v687 = vunpack.c.l.b16 %v623
          %v688 = vunpack.c.l.b16 %v624
          %v689 = vunpack.c.l.b16 %v625
          %v690 = vunpack.c.l.b16 %v626
          %v691 = vunpack.c.l.b16 %v627
          %v692 = vpack.c.b16 %v677, %v676
          %v693 = vpack.c.b16 %v679, %v678
          %v694 = vpack.c.b16 %v681, %v680
          %v695 = vpack.c.b16 %v683, %v682
          %v696 = vpack.c.b16 %v685, %v684
          %v697 = vpack.c.b16 %v687, %v686
          %v698 = vpack.c.b16 %v689, %v688
          %v699 = vpack.c.b16 %v691, %v690
          %v724 = vunpack.c.l.b16 %v644
          %v725 = vunpack.c.l.b16 %v645
          %v726 = vunpack.c.l.b16 %v646
          %v727 = vunpack.c.l.b16 %v647
          %v728 = vunpack.c.l.b16 %v648
          %v729 = vunpack.c.l.b16 %v649
          %v730 = vunpack.c.l.b16 %v650
          %v731 = vunpack.c.l.b16 %v651
          %v732 = vunpack.c.l.b16 %v652
          %v733 = vunpack.c.l.b16 %v653
          %v734 = vunpack.c.l.b16 %v654
          %v735 = vunpack.c.l.b16 %v655
          %v736 = vunpack.c.l.b16 %v656
          %v737 = vunpack.c.l.b16 %v657
          %v738 = vunpack.c.l.b16 %v658
          %v739 = vunpack.c.l.b16 %v659
          %v740 = vpack.c.b16 %v725, %v724
          %v741 = vpack.c.b16 %v727, %v726
          %v742 = vpack.c.b16 %v729, %v728
          %v743 = vpack.c.b16 %v731, %v730
          %v744 = vpack.c.b16 %v733, %v732
          %v745 = vpack.c.b16 %v735, %v734
          %v746 = vpack.c.b16 %v737, %v736
          %v747 = vpack.c.b16 %v739, %v738
          %v756 = vld [vmem:[#allocation9] sm:$0xf]
          %v757 = vld [vmem:[#allocation9 + $0x4] sm:$0xf]
          %v758 = vld [vmem:[#allocation9 + $0x8] sm:$0xf]
          %v759 = vld [vmem:[#allocation9 + $0xc] sm:$0xf]
          %v760 = vld [vmem:[#allocation9 + $0x10] sm:$0xf]
          %v761 = vld [vmem:[#allocation9 + $0x14] sm:$0xf]
          %v762 = vld [vmem:[#allocation9 + $0x18] sm:$0xf]
          %v763 = vld [vmem:[#allocation9 + $0x1c] sm:$0xf]
          %v764 = vld [vmem:[#allocation9 + $0x20] sm:$0xf]
          %v765 = vld [vmem:[#allocation9 + $0x24] sm:$0xf]
          %v766 = vld [vmem:[#allocation9 + $0x28] sm:$0xf]
          %v767 = vld [vmem:[#allocation9 + $0x2c] sm:$0xf]
          %v768 = vld [vmem:[#allocation9 + $0x30] sm:$0xf]
          %v769 = vld [vmem:[#allocation9 + $0x34] sm:$0xf]
          %v770 = vld [vmem:[#allocation9 + $0x38] sm:$0xf]
          %v771 = vld [vmem:[#allocation9 + $0x3c] sm:$0xf]
          %v772 = vld [vmem:[#allocation9 + $0x40] sm:$0xf]
          %v773 = vld [vmem:[#allocation9 + $0x44] sm:$0xf]
          %v774 = vld [vmem:[#allocation9 + $0x48] sm:$0xf]
          %v775 = vld [vmem:[#allocation9 + $0x4c] sm:$0xf]
          %v776 = vld [vmem:[#allocation9 + $0x50] sm:$0xf]
          %v777 = vld [vmem:[#allocation9 + $0x54] sm:$0xf]
          %v778 = vld [vmem:[#allocation9 + $0x58] sm:$0xf]
          %v779 = vld [vmem:[#allocation9 + $0x5c] sm:$0xf]
          %v780 = vld [vmem:[#allocation9 + $0x60] sm:$0xf]
          %v781 = vld [vmem:[#allocation9 + $0x64] sm:$0xf]
          %v782 = vld [vmem:[#allocation9 + $0x68] sm:$0xf]
          %v783 = vld [vmem:[#allocation9 + $0x6c] sm:$0xf]
          %v784 = vld [vmem:[#allocation9 + $0x70] sm:$0xf]
          %v785 = vld [vmem:[#allocation9 + $0x74] sm:$0xf]
          %v786 = vld [vmem:[#allocation9 + $0x78] sm:$0xf]
          %v787 = vld [vmem:[#allocation9 + $0x7c] sm:$0xf]
          %v788 = vld [vmem:[%s4] sm:$0x1]
          %v790 = vperm.slane %v788, 0
          %v824 = vunpack.c.l.b16 %v756
          %v825 = vunpack.c.l.b16 %v757
          %v826 = vunpack.c.l.b16 %v758
          %v827 = vunpack.c.l.b16 %v759
          %v828 = vunpack.c.l.b16 %v760
          %v829 = vunpack.c.l.b16 %v761
          %v830 = vunpack.c.l.b16 %v762
          %v831 = vunpack.c.l.b16 %v763
          %v832 = vunpack.c.l.b16 %v764
          %v833 = vunpack.c.l.b16 %v765
          %v834 = vunpack.c.l.b16 %v766
          %v835 = vunpack.c.l.b16 %v767
          %v836 = vunpack.c.l.b16 %v768
          %v837 = vunpack.c.l.b16 %v769
          %v838 = vunpack.c.l.b16 %v770
          %v839 = vunpack.c.l.b16 %v771
          %v840 = vunpack.c.l.b16 %v772
          %v841 = vunpack.c.l.b16 %v773
          %v842 = vunpack.c.l.b16 %v774
          %v843 = vunpack.c.l.b16 %v775
          %v844 = vunpack.c.l.b16 %v776
          %v845 = vunpack.c.l.b16 %v777
          %v846 = vunpack.c.l.b16 %v778
          %v847 = vunpack.c.l.b16 %v779
          %v848 = vunpack.c.l.b16 %v780
          %v849 = vunpack.c.l.b16 %v781
          %v850 = vunpack.c.l.b16 %v782
          %v851 = vunpack.c.l.b16 %v783
          %v852 = vunpack.c.l.b16 %v784
          %v853 = vunpack.c.l.b16 %v785
          %v854 = vunpack.c.l.b16 %v786
          %v855 = vunpack.c.l.b16 %v787
          %v856 = vpack.c.b16 %v825, %v824
          %v857 = vpack.c.b16 %v827, %v826
          %v858 = vpack.c.b16 %v829, %v828
          %v859 = vpack.c.b16 %v831, %v830
          %v860 = vpack.c.b16 %v833, %v832
          %v861 = vpack.c.b16 %v835, %v834
          %v862 = vpack.c.b16 %v837, %v836
          %v863 = vpack.c.b16 %v839, %v838
          %v864 = vpack.c.b16 %v841, %v840
          %v865 = vpack.c.b16 %v843, %v842
          %v866 = vpack.c.b16 %v845, %v844
          %v867 = vpack.c.b16 %v847, %v846
          %v868 = vpack.c.b16 %v849, %v848
          %v869 = vpack.c.b16 %v851, %v850
          %v870 = vpack.c.b16 %v853, %v852
          %v871 = vpack.c.b16 %v855, %v854
          %888 = vmatpush.bf16.msra.mxu0 %v863
          %889 = vmatpush.bf16.msra.mxu0 %v862
          %890 = vmatpush.bf16.msra.mxu0 %v861
          %891 = vmatpush.bf16.msra.mxu0 %v860
          %892 = vmatpush.bf16.msra.mxu0 %v859
          %893 = vmatpush.bf16.msra.mxu0 %v858
          %894 = vmatpush.bf16.msra.mxu0 %v857
          %895 = vmatpush.bf16.msra.mxu0 %v856
          %896 = vmatmul.bf16.gmra.mxu0 %v692
          %v897 = vpop.f32.mrf.mxu0
          %v898 = vadd.f32 %v790, %v897
          %v899 = vpop.f32.mrf.mxu0
          %v900 = vadd.f32 %v790, %v899
          %901 = vmatmul.bf16.gmra.mxu0 %v693
          %v902 = vpop.f32.mrf.mxu0
          %v903 = vadd.f32 %v790, %v902
          %v904 = vpop.f32.mrf.mxu0
          %v905 = vadd.f32 %v790, %v904
          %906 = vmatmul.bf16.gmra.mxu0 %v694
          %v907 = vpop.f32.mrf.mxu0
          %v908 = vadd.f32 %v790, %v907
          %v909 = vpop.f32.mrf.mxu0
          %v910 = vadd.f32 %v790, %v909
          %911 = vmatmul.bf16.gmra.mxu0 %v695
          %v912 = vpop.f32.mrf.mxu0
          %v913 = vadd.f32 %v790, %v912
          %v914 = vpop.f32.mrf.mxu0
          %v915 = vadd.f32 %v790, %v914
          %916 = vmatmul.bf16.gmra.mxu0 %v696
          %v917 = vpop.f32.mrf.mxu0
          %v918 = vadd.f32 %v790, %v917
          %v919 = vpop.f32.mrf.mxu0
          %v920 = vadd.f32 %v790, %v919
          %921 = vmatmul.bf16.gmra.mxu0 %v697
          %v922 = vpop.f32.mrf.mxu0
          %v923 = vadd.f32 %v790, %v922
          %v924 = vpop.f32.mrf.mxu0
          %v925 = vadd.f32 %v790, %v924
          %926 = vmatmul.bf16.gmra.mxu0 %v698
          %v927 = vpop.f32.mrf.mxu0
          %v928 = vadd.f32 %v790, %v927
          %v929 = vpop.f32.mrf.mxu0
          %v930 = vadd.f32 %v790, %v929
          %931 = vmatmul.bf16.gmra.mxu0 %v699
          %v932 = vpop.f32.mrf.mxu0
          %v933 = vadd.f32 %v790, %v932
          %v934 = vpop.f32.mrf.mxu0
          %v935 = vadd.f32 %v790, %v934
          %936 = vdwg.mxu0
          %937 = vmatpush.bf16.msra.mxu0 %v871
          %938 = vmatpush.bf16.msra.mxu0 %v870
          %939 = vmatpush.bf16.msra.mxu0 %v869
          %940 = vmatpush.bf16.msra.mxu0 %v868
          %941 = vmatpush.bf16.msra.mxu0 %v867
          %942 = vmatpush.bf16.msra.mxu0 %v866
          %943 = vmatpush.bf16.msra.mxu0 %v865
          %944 = vmatpush.bf16.msra.mxu0 %v864
          %945 = vmatmul.bf16.gmra.mxu0 %v740
          %v946 = vpop.f32.mrf.mxu0
          %v947 = vadd.f32 %v898, %v946
          %v948 = vpop.f32.mrf.mxu0
          %v949 = vadd.f32 %v900, %v948
          %950 = vmatmul.bf16.gmra.mxu0 %v741
          %v951 = vpop.f32.mrf.mxu0
          %v952 = vadd.f32 %v903, %v951
          %v953 = vpop.f32.mrf.mxu0
          %v954 = vadd.f32 %v905, %v953
          %955 = vmatmul.bf16.gmra.mxu0 %v742
          %v956 = vpop.f32.mrf.mxu0
          %v957 = vadd.f32 %v908, %v956
          %v958 = vpop.f32.mrf.mxu0
          %v959 = vadd.f32 %v910, %v958
          %960 = vmatmul.bf16.gmra.mxu0 %v743
          %v961 = vpop.f32.mrf.mxu0
          %v962 = vadd.f32 %v913, %v961
          %v963 = vpop.f32.mrf.mxu0
          %v964 = vadd.f32 %v915, %v963
          %965 = vmatmul.bf16.gmra.mxu0 %v744
          %v966 = vpop.f32.mrf.mxu0
          %v967 = vadd.f32 %v918, %v966
          %v968 = vpop.f32.mrf.mxu0
          %v969 = vadd.f32 %v920, %v968
          %970 = vmatmul.bf16.gmra.mxu0 %v745
          %v971 = vpop.f32.mrf.mxu0
          %v972 = vadd.f32 %v923, %v971
          %v973 = vpop.f32.mrf.mxu0
          %v974 = vadd.f32 %v925, %v973
          %975 = vmatmul.bf16.gmra.mxu0 %v746
          %v976 = vpop.f32.mrf.mxu0
          %v977 = vadd.f32 %v928, %v976
          %v978 = vpop.f32.mrf.mxu0
          %v979 = vadd.f32 %v930, %v978
          %980 = vmatmul.bf16.gmra.mxu0 %v747
          %v981 = vpop.f32.mrf.mxu0
          %v982 = vadd.f32 %v933, %v981
          %v983 = vpop.f32.mrf.mxu0
          %v984 = vadd.f32 %v935, %v983
          %985 = vdwg.mxu0
          %v986 = vmax.f32 %v947, 0.0
          %v987 = vmax.f32 %v949, 0.0
          %v988 = vmax.f32 %v952, 0.0
          %v989 = vmax.f32 %v954, 0.0
          %v990 = vmax.f32 %v957, 0.0
          %v991 = vmax.f32 %v959, 0.0
          %v992 = vmax.f32 %v962, 0.0
          %v993 = vmax.f32 %v964, 0.0
          %v994 = vmax.f32 %v967, 0.0
          %v995 = vmax.f32 %v969, 0.0
          %v996 = vmax.f32 %v972, 0.0
          %v997 = vmax.f32 %v974, 0.0
          %v998 = vmax.f32 %v977, 0.0
          %v999 = vmax.f32 %v979, 0.0
          %v1000 = vmax.f32 %v982, 0.0
          %v1001 = vmax.f32 %v984, 0.0
          %v1002 = vpack.c.bf16 %v986, %v986
          %v1003 = vpack.c.bf16 %v987, %v987
          %v1004 = vpack.c.bf16 %v988, %v988
          %v1005 = vpack.c.bf16 %v989, %v989
          %v1006 = vpack.c.bf16 %v990, %v990
          %v1007 = vpack.c.bf16 %v991, %v991
          %v1008 = vpack.c.bf16 %v992, %v992
          %v1009 = vpack.c.bf16 %v993, %v993
          %v1010 = vpack.c.bf16 %v994, %v994
          %v1011 = vpack.c.bf16 %v995, %v995
          %v1012 = vpack.c.bf16 %v996, %v996
          %v1013 = vpack.c.bf16 %v997, %v997
          %v1014 = vpack.c.bf16 %v998, %v998
          %v1015 = vpack.c.bf16 %v999, %v999
          %v1016 = vpack.c.bf16 %v1000, %v1000
          %v1017 = vpack.c.bf16 %v1001, %v1001
          %1018 = vst [vmem:[%s358] sm:$0xf] %v1002
          %1019 = vst [vmem:[%s358 + $0x4] sm:$0xf] %v1003
          %1020 = vst [vmem:[%s358 + $0x8] sm:$0xf] %v1004
          %1021 = vst [vmem:[%s358 + $0xc] sm:$0xf] %v1005
          %1022 = vst [vmem:[%s358 + $0x10] sm:$0xf] %v1006
          %1023 = vst [vmem:[%s358 + $0x14] sm:$0xf] %v1007
          %1024 = vst [vmem:[%s358 + $0x18] sm:$0xf] %v1008
          %1025 = vst [vmem:[%s358 + $0x1c] sm:$0xf] %v1009
          %1026 = vst [vmem:[%s358 + $0x20] sm:$0xf] %v1010
          %1027 = vst [vmem:[%s358 + $0x24] sm:$0xf] %v1011
          %1028 = vst [vmem:[%s358 + $0x28] sm:$0xf] %v1012
          %1029 = vst [vmem:[%s358 + $0x2c] sm:$0xf] %v1013
          %1030 = vst [vmem:[%s358 + $0x30] sm:$0xf] %v1014
          %1031 = vst [vmem:[%s358 + $0x34] sm:$0xf] %v1015
          %1032 = vst [vmem:[%s358 + $0x38] sm:$0xf] %v1016
          %1033 = vst [vmem:[%s358 + $0x3c] sm:$0xf] %v1017
        $region64: #{tpu_custom_call.1} parent=39 // pred_fallthru
          _
        %s1034 = sand.u32 %s168, 1
        %s1035 = scalar_lea.sflag [#allocation5], %s1034
        %s1036 = sand.u32 %s168, 1
        %s1037 = smul.addr %s1036, 64
        %s1038 = scalar_lea.vmem [#allocation11], %s1037
        // Predicated region
        $region65: #{tpu_custom_call.1} parent=39 // pred_check
          %p1039 = pneg %p178
        $region66: #{tpu_custom_call.1} parent=39 // pred_check_branch
          %1041 = sbr.rel (%p1039) target = $region68
        $region67: #{tpu_custom_call.1} parent=39 // pred_region
          %s1042 = smul.u32 16, %s30
          %1044 = vsyncadd %s1035, 0
          %s1045 = smul.addr %s1042, 4
          %s1046 = scalar_lea.hbm %s5, %s1045
          %s1047 = sshll.u32 %s1038, 4
          %s1048 = int_to_ptr.vmem [resolvable:$true] %s1047
          %s1049 = sshll.u32 %s1046, 4
          %s1050 = int_to_ptr.hbm [resolvable:$true] %s1049
          %1055 = dma.vmem_to_hbm [thread:$0]  %s1048, 1024, %s1050, %s1035, 64, 64, 4
        $region68: #{tpu_custom_call.1} parent=39 // pred_fallthru
          _
      $region40: #{tpu_custom_call.1} parent=5 // pred_fallthru
        _
      %p1056 = scmp.le.s32.totalorder 2, %s21
      // Predicated region
      $region69: #{tpu_custom_call.1} parent=5 // pred_check
        %p1057 = pneg %p1056
      $region70: #{tpu_custom_call.1} parent=5 // pred_check_branch
        %1059 = sbr.rel (%p1057) target = $region72
      $region71: #{tpu_custom_call.1} parent=5 // pred_region
        %s1060 = ssub.s32 %s21, 2
        // Predicated region
        $region73: #{tpu_custom_call.1} parent=71 // pred_check
          %p1061 = pneg %p184
        $region74: #{tpu_custom_call.1} parent=71 // pred_check_branch
          %1063 = sbr.rel (%p1061) target = $region76
        $region75: #{tpu_custom_call.1} parent=71 // pred_region
          %s1064 = sand.u32 %s169, 1
          %s1065 = scalar_lea.sflag [#allocation5], %s1064
          %s1066 = sand.u32 %s169, 1
          %s1067 = smul.addr %s1066, 64
          %s1068 = scalar_lea.vmem [#allocation11], %s1067
          %1070 = dma.done %s1065, 1024
        $region76: #{tpu_custom_call.1} parent=71 // pred_fallthru
          _
      $region72: #{tpu_custom_call.1} parent=5 // pred_fallthru
        _
    $region6: #{tpu_custom_call.1} parent=1 // loop_footer
      %s25 = sadd.s32 1, %s21
    $region7: #{tpu_custom_call.1} parent=1 // loop_footer_branch
      %20 = sbr.rel target = $region3
    $region8: #{tpu_custom_call.1} parent=1 // loop_exit
      _
    %1071 = vsyncpa [#allocation4], 1
    %s1072 = scalar_lea.sflag [#allocation4], 1
    %1073 = vsyncpa %s1072, 1
    %1074 = vsyncpa [#allocation7], 1
    %s1075 = scalar_lea.sflag [#allocation7], 1
    %1076 = vsyncpa %s1075, 1
    %1077 = vsyncpa [#allocation10], 1
    %1078 = vsyncpa [#allocation5], 1
    %s1079 = scalar_lea.sflag [#allocation5], 1
    %1080 = vsyncpa %s1079, 1

</llo_original>
